<compile_context>
chip_gen: v5e
topology: v5e:2x2
jax: 0.10.0
libtpu: 0.0.40
codegen_flags: <defaults>
</compile_context>

<pallas_src>
import math
import jax
import jax.numpy as jnp
from jax import lax
from jax.experimental import pallas as pl
from jax.experimental.pallas import tpu as pltpu

# Hyperparameters implied by the module (undefined in the reference; chosen small).
IN_FEATURES = 32
OUT_FEATURES = 32
BATCH = 2
SEQ = 8


def _attn_kernel(q_ref, k_ref, v_ref,
                 wq_ref, bq_ref, wk_ref, bk_ref, wv_ref, bv_ref,
                 mask_ref, o_ref):
    # Three tiny projection matmuls (MXU); no lane slicing anywhere.
    qp = jnp.dot(q_ref[...], wq_ref[...],
                 preferred_element_type=jnp.float32) + bq_ref[...]      # (16, 32)
    kp = jnp.dot(k_ref[...], wk_ref[...],
                 preferred_element_type=jnp.float32) + bk_ref[...]      # (16, 32)
    vp = jnp.dot(v_ref[...], wv_ref[...],
                 preferred_element_type=jnp.float32) + bv_ref[...]      # (16, 32)

    # scores = qp @ kp^T without an explicit transpose (contract last dims).
    scores = lax.dot_general(qp, kp, (((1,), (1,)), ((), ())),
                             preferred_element_type=jnp.float32)        # (16, 16)

    # Faithful to the reference: divide by 1/sqrt(d) == multiply by sqrt(d),
    # then add the precomputed cross-batch additive mask (0 / -1e30).
    scores = scores * jnp.float32(math.sqrt(OUT_FEATURES)) + mask_ref[...]

    # Numerically stable softmax along the last axis (exact divide).
    m = jnp.max(scores, axis=-1, keepdims=True)
    e = jnp.exp(scores - m)
    denom = jnp.sum(e, axis=-1, keepdims=True)
    p = e / denom

    out = jnp.dot(p, vp, preferred_element_type=jnp.float32)            # (16, 32)
    o_ref[...] = out.astype(o_ref.dtype)


@jax.jit
def attention_model(q, k, v, wq, bq, wk, bk, wv, bv):
    B, S, Din = q.shape
    Dout = wq.shape[1]
    BS = B * S

    # Free layout marshalling under the same jit: fold batch into sublanes.
    q2 = q.reshape(BS, Din)
    k2 = k.reshape(BS, Din)
    v2 = v.reshape(BS, Din)

    # Constant additive cross-batch mask (constant-folded at compile time):
    # 0 where rows/cols belong to the same batch element, -1e30 otherwise.
    row_b = lax.broadcasted_iota(jnp.int32, (BS, BS), 0) // S
    col_b = lax.broadcasted_iota(jnp.int32, (BS, BS), 1) // S
    mask = jnp.where(row_b == col_b, 0.0, -1e30).astype(jnp.float32)

    vmem = pl.BlockSpec(memory_space=pltpu.MemorySpace.VMEM)
    out2d = pl.pallas_call(
        _attn_kernel,
        out_shape=jax.ShapeDtypeStruct((BS, Dout), jnp.float32),
        in_specs=[vmem] * 10,
        out_specs=vmem,
    )(q2, k2, v2, wq, bq, wk, bk, wv, bv, mask)

    return out2d.reshape(B, S, Dout)


def reference(q, k, v, wq, bq, wk, bk, wv, bv):
    qp = q @ wq + bq
    kp = k @ wk + bk
    vp = v @ wv + bv
    scores = jnp.einsum("bsd,btd->bst", qp, kp) * math.sqrt(OUT_FEATURES)
    p = jax.nn.softmax(scores, axis=-1)
    return jnp.einsum("bst,btd->bsd", p, vp)


if __name__ == "__main__":
    key = jax.random.PRNGKey(0)
    keys = jax.random.split(key, 9)

    q = jax.random.normal(keys[0], (BATCH, SEQ, IN_FEATURES), dtype=jnp.float32)
    k = jax.random.normal(keys[1], (BATCH, SEQ, IN_FEATURES), dtype=jnp.float32)
    v = jax.random.normal(keys[2], (BATCH, SEQ, IN_FEATURES), dtype=jnp.float32)

    # Deterministic parameter init (Linear weights stored as (in, out)).
    lim = 1.0 / math.sqrt(IN_FEATURES)
    wq = jax.random.uniform(keys[3], (IN_FEATURES, OUT_FEATURES), minval=-lim, maxval=lim)
    wk = jax.random.uniform(keys[4], (IN_FEATURES, OUT_FEATURES), minval=-lim, maxval=lim)
    wv = jax.random.uniform(keys[5], (IN_FEATURES, OUT_FEATURES), minval=-lim, maxval=lim)
    bq = jax.random.uniform(keys[6], (1, OUT_FEATURES), minval=-lim, maxval=lim)
    bk = jax.random.uniform(keys[7], (1, OUT_FEATURES), minval=-lim, maxval=lim)
    bv = jax.random.uniform(keys[8], (1, OUT_FEATURES), minval=-lim, maxval=lim)

    out = attention_model(q, k, v, wq, bq, wk, bk, wv, bv)
    jax.block_until_ready(out)

    ref = reference(q, k, v, wq, bq, wk, bk, wv, bv)
    assert out.shape == (BATCH, SEQ, OUT_FEATURES)
    assert jnp.allclose(out, ref, atol=1e-4, rtol=1e-4), "mismatch vs reference"

    print("KERNEL_OK")
</pallas_src>

<mosaic_0001>
module attributes {stable_mosaic.version = 11 : i64} {
  func.func @_attn_kernel(%arg0: memref<16x32xf32, #tpu.memory_space<vmem>>, %arg1: memref<16x32xf32, #tpu.memory_space<vmem>>, %arg2: memref<16x32xf32, #tpu.memory_space<vmem>>, %arg3: memref<32x32xf32, #tpu.memory_space<vmem>>, %arg4: memref<1x32xf32, #tpu.memory_space<vmem>>, %arg5: memref<32x32xf32, #tpu.memory_space<vmem>>, %arg6: memref<1x32xf32, #tpu.memory_space<vmem>>, %arg7: memref<32x32xf32, #tpu.memory_space<vmem>>, %arg8: memref<1x32xf32, #tpu.memory_space<vmem>>, %arg9: memref<16x16xf32, #tpu.memory_space<vmem>>, %arg10: memref<16x32xf32, #tpu.memory_space<vmem>>) attributes {dimension_semantics = [], scalar_prefetch = 0 : i64, scratch_operands = 0 : i64, tpu.core_type = #tpu.core_type<tc>} {
    %c0 = arith.constant 0 : index
    %c0_0 = arith.constant 0 : index
    %0 = vector.load %arg0[%c0, %c0_0] : memref<16x32xf32, #tpu.memory_space<vmem>>, vector<16x32xf32>
    %c0_1 = arith.constant 0 : index
    %c0_2 = arith.constant 0 : index
    %1 = vector.load %arg3[%c0_1, %c0_2] : memref<32x32xf32, #tpu.memory_space<vmem>>, vector<32x32xf32>
    %cst = arith.constant dense<0.000000e+00> : vector<16x32xf32>
    %2 = tpu.matmul %0, %1, %cst {dimension_numbers = #tpu.dot_dimension_numbers<[1], [0], [0], [1], [0, 0, 1, 1], [], []>} : vector<16x32xf32>, vector<32x32xf32>, vector<16x32xf32> -> vector<16x32xf32>
    %c0_3 = arith.constant 0 : index
    %c0_4 = arith.constant 0 : index
    %3 = vector.load %arg4[%c0_3, %c0_4] : memref<1x32xf32, #tpu.memory_space<vmem>>, vector<1x32xf32>
    %4 = vector.broadcast %3 : vector<1x32xf32> to vector<16x32xf32>
    %5 = arith.addf %2, %4 : vector<16x32xf32>
    %c0_5 = arith.constant 0 : index
    %c0_6 = arith.constant 0 : index
    %6 = vector.load %arg1[%c0_5, %c0_6] : memref<16x32xf32, #tpu.memory_space<vmem>>, vector<16x32xf32>
    %c0_7 = arith.constant 0 : index
    %c0_8 = arith.constant 0 : index
    %7 = vector.load %arg5[%c0_7, %c0_8] : memref<32x32xf32, #tpu.memory_space<vmem>>, vector<32x32xf32>
    %cst_9 = arith.constant dense<0.000000e+00> : vector<16x32xf32>
    %8 = tpu.matmul %6, %7, %cst_9 {dimension_numbers = #tpu.dot_dimension_numbers<[1], [0], [0], [1], [0, 0, 1, 1], [], []>} : vector<16x32xf32>, vector<32x32xf32>, vector<16x32xf32> -> vector<16x32xf32>
    %c0_10 = arith.constant 0 : index
    %c0_11 = arith.constant 0 : index
    %9 = vector.load %arg6[%c0_10, %c0_11] : memref<1x32xf32, #tpu.memory_space<vmem>>, vector<1x32xf32>
    %10 = vector.broadcast %9 : vector<1x32xf32> to vector<16x32xf32>
    %11 = arith.addf %8, %10 : vector<16x32xf32>
    %c0_12 = arith.constant 0 : index
    %c0_13 = arith.constant 0 : index
    %12 = vector.load %arg2[%c0_12, %c0_13] : memref<16x32xf32, #tpu.memory_space<vmem>>, vector<16x32xf32>
    %c0_14 = arith.constant 0 : index
    %c0_15 = arith.constant 0 : index
    %13 = vector.load %arg7[%c0_14, %c0_15] : memref<32x32xf32, #tpu.memory_space<vmem>>, vector<32x32xf32>
    %cst_16 = arith.constant dense<0.000000e+00> : vector<16x32xf32>
    %14 = tpu.matmul %12, %13, %cst_16 {dimension_numbers = #tpu.dot_dimension_numbers<[1], [0], [0], [1], [0, 0, 1, 1], [], []>} : vector<16x32xf32>, vector<32x32xf32>, vector<16x32xf32> -> vector<16x32xf32>
    %c0_17 = arith.constant 0 : index
    %c0_18 = arith.constant 0 : index
    %15 = vector.load %arg8[%c0_17, %c0_18] : memref<1x32xf32, #tpu.memory_space<vmem>>, vector<1x32xf32>
    %16 = vector.broadcast %15 : vector<1x32xf32> to vector<16x32xf32>
    %17 = arith.addf %14, %16 : vector<16x32xf32>
    %cst_19 = arith.constant dense<0.000000e+00> : vector<16x16xf32>
    %18 = tpu.matmul %5, %11, %cst_19 {dimension_numbers = #tpu.dot_dimension_numbers<[1], [1], [0], [0], [0, 0, 1, 0], [], []>} : vector<16x32xf32>, vector<16x32xf32>, vector<16x16xf32> -> vector<16x16xf32>
    %cst_20 = arith.constant 5.65685415 : f32
    %19 = vector.broadcast %cst_20 : f32 to vector<16x16xf32>
    %20 = arith.mulf %18, %19 : vector<16x16xf32>
    %c0_21 = arith.constant 0 : index
    %c0_22 = arith.constant 0 : index
    %21 = vector.load %arg9[%c0_21, %c0_22] : memref<16x16xf32, #tpu.memory_space<vmem>>, vector<16x16xf32>
    %22 = arith.addf %20, %21 : vector<16x16xf32>
    %cst_23 = arith.constant dense<0xFF800000> : vector<16xf32>
    %23 = vector.multi_reduction <maximumf>, %22, %cst_23 [1] : vector<16x16xf32> to vector<16xf32>
    %24 = vector.shape_cast %23 : vector<16xf32> to vector<16x1xf32>
    %25 = vector.broadcast %24 : vector<16x1xf32> to vector<16x16xf32>
    %26 = arith.subf %22, %25 : vector<16x16xf32>
    %27 = math.exp %26 : vector<16x16xf32>
    %cst_24 = arith.constant dense<0.000000e+00> : vector<16xf32>
    %28 = vector.multi_reduction <add>, %27, %cst_24 [1] : vector<16x16xf32> to vector<16xf32>
    %29 = vector.shape_cast %28 : vector<16xf32> to vector<16x1xf32>
    %30 = vector.broadcast %29 : vector<16x1xf32> to vector<16x16xf32>
    %31 = arith.divf %27, %30 : vector<16x16xf32>
    %cst_25 = arith.constant dense<0.000000e+00> : vector<16x32xf32>
    %32 = tpu.matmul %31, %17, %cst_25 {dimension_numbers = #tpu.dot_dimension_numbers<[1], [0], [0], [1], [0, 0, 1, 1], [], []>} : vector<16x16xf32>, vector<16x32xf32>, vector<16x32xf32> -> vector<16x32xf32>
    %c0_26 = arith.constant 0 : index
    %c0_27 = arith.constant 0 : index
    %33 = vector.load %arg10[%c0_26, %c0_27] : memref<16x32xf32, #tpu.memory_space<vmem>>, vector<16x32xf32>
    tpu.vector_store %arg10[%c0_26, %c0_27], %32 {strides = array<i32>} : memref<16x32xf32, #tpu.memory_space<vmem>>, vector<16x32xf32>,
    return
  }
}

</mosaic_0001>

<llo_original>
// kernel: attention_model.1
$region0: #{attention_model.1}
  #allocation0 [shape = 'u32[]', space=smem, size = 0x4, offset = 0x4, fixed_abs, tag = 'smem constant byte address 0x4 - core index']
  #allocation1 [shape = 'u32[72,128]{1,0:T(1,128)}', space=vmem, size = 0x9000, scoped, tag = 'internal scratch']
  %s0 = inlined_call_operand.hbm [shape: f32[16,32], index: 0, kind: input, shape index: {}]
  %s1 = inlined_call_operand.hbm [shape: f32[16,32], index: 1, kind: input, shape index: {}]
  %s2 = inlined_call_operand.hbm [shape: f32[16,32], index: 2, kind: input, shape index: {}]
  %s3 = inlined_call_operand.hbm [shape: f32[32,32], index: 3, kind: input, shape index: {}]
  %s4 = inlined_call_operand.hbm [shape: f32[1,32], index: 4, kind: input, shape index: {}]
  %s5 = inlined_call_operand.vmem [shape: f32[32,32], index: 5, kind: input, shape index: {}]
  %s6 = inlined_call_operand.vmem [shape: f32[1,32], index: 6, kind: input, shape index: {}]
  %s7 = inlined_call_operand.hbm [shape: f32[32,32], index: 7, kind: input, shape index: {}]
  %s8 = inlined_call_operand.vmem [shape: f32[1,32], index: 8, kind: input, shape index: {}]
  %s9 = inlined_call_operand.vmem [shape: f32[16,16], index: 9, kind: input, shape index: {}]
  %s10 = inlined_call_operand.hbm [shape: f32[16,32], index: 10, kind: output, shape index: {}]
  %s11 = sld [smem:[#allocation0]]
  $region74: #{attention_model.1} parent=0
    _
  %s13 = ssub.s32 1, %s11
  %s14 = scalar_select 0, %s13, %s11
  $region1: #{attention_model.1} parent=0
    #allocation2 [shape = 'u8[8192]{0}', space=vmem, size = 0x2000, scoped, tag = 'input window, operand 0, single buffered']
    #allocation3 [shape = 's32[1]{0}', space=sflag, size = 0x4, scoped, tag = 'scoped memory for attention_model.1']
    #allocation4 [shape = 's32[1]{0}', space=sflag, size = 0x4, scoped, tag = 'scoped memory for attention_model.1']
    #allocation5 [shape = 'u8[8192]{0}', space=vmem, size = 0x2000, scoped, tag = 'input window, operand 1, single buffered']
    #allocation6 [shape = 's32[1]{0}', space=sflag, size = 0x4, scoped, tag = 'scoped memory for attention_model.1']
    #allocation7 [shape = 'u8[8192]{0}', space=vmem, size = 0x2000, scoped, tag = 'input window, operand 2, single buffered']
    #allocation8 [shape = 'u8[16384]{0}', space=vmem, size = 0x4000, scoped, tag = 'input window, operand 3, single buffered']
    #allocation9 [shape = 's32[1]{0}', space=sflag, size = 0x4, scoped, tag = 'scoped memory for attention_model.1']
    #allocation10 [shape = 'u8[512]{0}', space=vmem, size = 0x400, scoped, tag = 'input window, operand 4, single buffered']
    #allocation11 [shape = 'u8[16384]{0}', space=vmem, size = 0x4000, scoped, tag = 'input window, operand 7, single buffered']
    #allocation12 [shape = 's32[1]{0}', space=sflag, size = 0x4, scoped, tag = 'scoped memory for attention_model.1']
    #allocation13 [shape = 'u8[8192]{0}', space=vmem, size = 0x2000, scoped, tag = 'output window, operand 0, single buffered']
    %15 = vsyncpa [#allocation3], 0
    %16 = vsyncpa [#allocation6], 0
    %17 = vsyncpa [#allocation9], 0
    %18 = vsyncpa [#allocation12], 0
    %19 = vsyncpa [#allocation4], 0
    // Predicated region
    $region2: #{attention_model.1} parent=1 // pred_check
      _
    $region3: #{attention_model.1} parent=1 // pred_check_branch
      %21 = sbr.rel (0) target = $region5
    $region4: #{attention_model.1} parent=1 // pred_region
      %23 = vsyncadd [#allocation3], 0
      %s24 = sshll.u32 %s0, 4
      %s25 = int_to_ptr.hbm [resolvable:$true] %s24
      %s26 = sshll.u32 [#allocation2], 4
      %s27 = int_to_ptr.vmem [resolvable:$true] %s26
      %32 = dma.hbm_to_vmem [thread:$0]  %s25, 256, %s27, [#allocation3], 128, 128, 8
    $region5: #{attention_model.1} parent=1 // pred_fallthru
      _
    // Predicated region
    $region6: #{attention_model.1} parent=1 // pred_check
      _
    $region7: #{attention_model.1} parent=1 // pred_check_branch
      %34 = sbr.rel (0) target = $region9
    $region8: #{attention_model.1} parent=1 // pred_region
      %36 = vsyncadd [#allocation6], 0
      %s37 = sshll.u32 %s1, 4
      %s38 = int_to_ptr.hbm [resolvable:$true] %s37
      %s39 = sshll.u32 [#allocation5], 4
      %s40 = int_to_ptr.vmem [resolvable:$true] %s39
      %45 = dma.hbm_to_vmem [thread:$0]  %s38, 256, %s40, [#allocation6], 128, 128, 8
    $region9: #{attention_model.1} parent=1 // pred_fallthru
      _
    // Predicated region
    $region10: #{attention_model.1} parent=1 // pred_check
      _
    $region11: #{attention_model.1} parent=1 // pred_check_branch
      %47 = sbr.rel (0) target = $region13
    $region12: #{attention_model.1} parent=1 // pred_region
      %49 = vsyncadd [#allocation6], 0
      %s50 = sshll.u32 %s2, 4
      %s51 = int_to_ptr.hbm [resolvable:$true] %s50
      %s52 = sshll.u32 [#allocation7], 4
      %s53 = int_to_ptr.vmem [resolvable:$true] %s52
      %58 = dma.hbm_to_vmem [thread:$0]  %s51, 256, %s53, [#allocation6], 128, 128, 8
    $region13: #{attention_model.1} parent=1 // pred_fallthru
      _
    // Predicated region
    $region14: #{attention_model.1} parent=1 // pred_check
      _
    $region15: #{attention_model.1} parent=1 // pred_check_branch
      %60 = sbr.rel (0) target = $region17
    $region16: #{attention_model.1} parent=1 // pred_region
      %62 = vsyncadd [#allocation9], 0
      %s63 = sshll.u32 %s3, 4
      %s64 = int_to_ptr.hbm [resolvable:$true] %s63
      %s65 = sshll.u32 [#allocation8], 4
      %s66 = int_to_ptr.vmem [resolvable:$true] %s65
      %71 = dma.hbm_to_vmem [thread:$0]  %s64, 512, %s66, [#allocation9], 128, 128, 8
    $region17: #{attention_model.1} parent=1 // pred_fallthru
      _
    // Predicated region
    $region18: #{attention_model.1} parent=1 // pred_check
      _
    $region19: #{attention_model.1} parent=1 // pred_check_branch
      %73 = sbr.rel (0) target = $region21
    $region20: #{attention_model.1} parent=1 // pred_region
      %75 = vsyncadd [#allocation9], 0
      %s77 = sshll.u32 %s4, 4
      %s78 = int_to_ptr.hbm [resolvable:$true] %s77
      %s79 = sshll.u32 [#allocation10], 4
      %s80 = int_to_ptr.vmem [resolvable:$true] %s79
      %82 = dma.hbm_to_vmem [thread:$0]  %s78, 16, %s80, [#allocation9]
    $region21: #{attention_model.1} parent=1 // pred_fallthru
      _
    // Predicated region
    $region22: #{attention_model.1} parent=1 // pred_check
      _
    $region23: #{attention_model.1} parent=1 // pred_check_branch
      %84 = sbr.rel (0) target = $region25
    $region24: #{attention_model.1} parent=1 // pred_region
      _
    $region25: #{attention_model.1} parent=1 // pred_fallthru
      _
    // Predicated region
    $region26: #{attention_model.1} parent=1 // pred_check
      _
    $region27: #{attention_model.1} parent=1 // pred_check_branch
      %86 = sbr.rel (0) target = $region29
    $region28: #{attention_model.1} parent=1 // pred_region
      _
    $region29: #{attention_model.1} parent=1 // pred_fallthru
      _
    // Predicated region
    $region30: #{attention_model.1} parent=1 // pred_check
      _
    $region31: #{attention_model.1} parent=1 // pred_check_branch
      %88 = sbr.rel (0) target = $region33
    $region32: #{attention_model.1} parent=1 // pred_region
      %90 = vsyncadd [#allocation12], 0
      %s91 = sshll.u32 %s7, 4
      %s92 = int_to_ptr.hbm [resolvable:$true] %s91
      %s93 = sshll.u32 [#allocation11], 4
      %s94 = int_to_ptr.vmem [resolvable:$true] %s93
      %99 = dma.hbm_to_vmem [thread:$0]  %s92, 512, %s94, [#allocation12], 128, 128, 8
    $region33: #{attention_model.1} parent=1 // pred_fallthru
      _
    // Predicated region
    $region34: #{attention_model.1} parent=1 // pred_check
      _
    $region35: #{attention_model.1} parent=1 // pred_check_branch
      %101 = sbr.rel (0) target = $region37
    $region36: #{attention_model.1} parent=1 // pred_region
      _
    $region37: #{attention_model.1} parent=1 // pred_fallthru
      _
    // Predicated region
    $region38: #{attention_model.1} parent=1 // pred_check
      _
    $region39: #{attention_model.1} parent=1 // pred_check_branch
      %103 = sbr.rel (0) target = $region41
    $region40: #{attention_model.1} parent=1 // pred_region
      _
    $region41: #{attention_model.1} parent=1 // pred_fallthru
      _
    // Predicated region
    $region42: #{attention_model.1} parent=1 // pred_check
      _
    $region43: #{attention_model.1} parent=1 // pred_check_branch
      %105 = sbr.rel (0) target = $region45
    $region44: #{attention_model.1} parent=1 // pred_region
      %107 = dma.done [#allocation3], 256
    $region45: #{attention_model.1} parent=1 // pred_fallthru
      _
    // Predicated region
    $region46: #{attention_model.1} parent=1 // pred_check
      _
    $region47: #{attention_model.1} parent=1 // pred_check_branch
      %109 = sbr.rel (0) target = $region49
    $region48: #{attention_model.1} parent=1 // pred_region
      %111 = dma.done [#allocation6], 256
    $region49: #{attention_model.1} parent=1 // pred_fallthru
      _
    // Predicated region
    $region50: #{attention_model.1} parent=1 // pred_check
      _
    $region51: #{attention_model.1} parent=1 // pred_check_branch
      %113 = sbr.rel (0) target = $region53
    $region52: #{attention_model.1} parent=1 // pred_region
      %115 = dma.done [#allocation6], 256
    $region53: #{attention_model.1} parent=1 // pred_fallthru
      _
    // Predicated region
    $region54: #{attention_model.1} parent=1 // pred_check
      _
    $region55: #{attention_model.1} parent=1 // pred_check_branch
      %117 = sbr.rel (0) target = $region57
    $region56: #{attention_model.1} parent=1 // pred_region
      %119 = dma.done [#allocation9], 512
    $region57: #{attention_model.1} parent=1 // pred_fallthru
      _
    // Predicated region
    $region58: #{attention_model.1} parent=1 // pred_check
      _
    $region59: #{attention_model.1} parent=1 // pred_check_branch
      %121 = sbr.rel (0) target = $region61
    $region60: #{attention_model.1} parent=1 // pred_region
      %123 = dma.done [#allocation9], 16
    $region61: #{attention_model.1} parent=1 // pred_fallthru
      _
    // Predicated region
    $region62: #{attention_model.1} parent=1 // pred_check
      _
    $region63: #{attention_model.1} parent=1 // pred_check_branch
      %125 = sbr.rel (0) target = $region65
    $region64: #{attention_model.1} parent=1 // pred_region
      %127 = dma.done [#allocation12], 512
    $region65: #{attention_model.1} parent=1 // pred_fallthru
      _
    %v128 = vld [vmem:[#allocation2] sm:$0xff]
    %v129 = vld [vmem:[#allocation2 + $0x8] sm:$0xff]
    %v130 = vld [vmem:[#allocation8] sm:$0xff]
    %v131 = vld [vmem:[#allocation8 + $0x8] sm:$0xff]
    %v132 = vld [vmem:[#allocation8 + $0x10] sm:$0xff]
    %v133 = vld [vmem:[#allocation8 + $0x18] sm:$0xff]
    %v134 = vld [vmem:[#allocation10] sm:$0x1]
    %v136 = vperm.slane %v134, 0
    %vm138 = vcmask 261120
    %v140 = vsel %vm138, %v128, 0
    %v143 = vsel %vm138, %v129, 0
    %145 = vmatpush.msra.mxu0 0.0
    %146 = vmatpush.msra.mxu0 0.0
    %147 = vmatpush.msra.mxu0 0.0
    %148 = vmatpush.msra.mxu0 0.0
    %149 = vmatpush.msra.mxu0 0.0
    %150 = vmatpush.msra.mxu0 0.0
    %151 = vmatpush.msra.mxu0 0.0
    %152 = vmatpush.msra.mxu0 0.0
    %153 = vmatpush.msra.mxu0 0.0
    %154 = vmatpush.msra.mxu0 0.0
    %155 = vmatpush.msra.mxu0 0.0
    %156 = vmatpush.msra.mxu0 0.0
    %157 = vmatpush.msra.mxu0 %v133
    %158 = vmatpush.msra.mxu0 %v132
    %159 = vmatpush.msra.mxu0 %v131
    %160 = vmatpush.msra.mxu0 %v130
    %161 = vmatmul.f32.gmra.mxu0 %v140
    %v162 = vpop.f32.mrf.mxu0
    %v163 = vadd.f32 %v136, %v162
    %164 = vmatmul.f32.gmra.mxu0 %v143
    %v165 = vpop.f32.mrf.mxu0
    %v166 = vadd.f32 %v136, %v165
    %167 = vdwg.mxu0
    %v168 = vld [vmem:[#allocation5] sm:$0xff]
    %v169 = vld [vmem:[#allocation5 + $0x8] sm:$0xff]
    %v170 = vld [vmem:[%s5] sm:$0xff]
    %v171 = vld [vmem:[%s5 + $0x8] sm:$0xff]
    %v172 = vld [vmem:[%s5 + $0x10] sm:$0xff]
    %v173 = vld [vmem:[%s5 + $0x18] sm:$0xff]
    %v174 = vld [vmem:[%s6] sm:$0x1]
    %v176 = vperm.slane %v174, 0
    %v179 = vsel %vm138, %v168, 0
    %v182 = vsel %vm138, %v169, 0
    %184 = vmatpush.msra.mxu0 0.0
    %185 = vmatpush.msra.mxu0 0.0
    %186 = vmatpush.msra.mxu0 0.0
    %187 = vmatpush.msra.mxu0 0.0
    %188 = vmatpush.msra.mxu0 0.0
    %189 = vmatpush.msra.mxu0 0.0
    %190 = vmatpush.msra.mxu0 0.0
    %191 = vmatpush.msra.mxu0 0.0
    %192 = vmatpush.msra.mxu0 0.0
    %193 = vmatpush.msra.mxu0 0.0
    %194 = vmatpush.msra.mxu0 0.0
    %195 = vmatpush.msra.mxu0 0.0
    %196 = vmatpush.msra.mxu0 %v173
    %197 = vmatpush.msra.mxu0 %v172
    %198 = vmatpush.msra.mxu0 %v171
    %199 = vmatpush.msra.mxu0 %v170
    %200 = vmatmul.f32.gmra.mxu0 %v179
    %v201 = vpop.f32.mrf.mxu0
    %v202 = vadd.f32 %v176, %v201
    %203 = vmatmul.f32.gmra.mxu0 %v182
    %v204 = vpop.f32.mrf.mxu0
    %v205 = vadd.f32 %v176, %v204
    %206 = vdwg.mxu0
    %v207 = vld [vmem:[#allocation7] sm:$0xff]
    %v208 = vld [vmem:[#allocation7 + $0x8] sm:$0xff]
    %v209 = vld [vmem:[#allocation11] sm:$0xff]
    %v210 = vld [vmem:[#allocation11 + $0x8] sm:$0xff]
    %v211 = vld [vmem:[#allocation11 + $0x10] sm:$0xff]
    %v212 = vld [vmem:[#allocation11 + $0x18] sm:$0xff]
    %v213 = vld [vmem:[%s8] sm:$0x1]
    %v215 = vperm.slane %v213, 0
    %v218 = vsel %vm138, %v207, 0
    %v221 = vsel %vm138, %v208, 0
    %223 = vmatpush.msra.mxu0 0.0
    %224 = vmatpush.msra.mxu0 0.0
    %225 = vmatpush.msra.mxu0 0.0
    %226 = vmatpush.msra.mxu0 0.0
    %227 = vmatpush.msra.mxu0 0.0
    %228 = vmatpush.msra.mxu0 0.0
    %229 = vmatpush.msra.mxu0 0.0
    %230 = vmatpush.msra.mxu0 0.0
    %231 = vmatpush.msra.mxu0 0.0
    %232 = vmatpush.msra.mxu0 0.0
    %233 = vmatpush.msra.mxu0 0.0
    %234 = vmatpush.msra.mxu0 0.0
    %235 = vmatpush.msra.mxu0 %v212
    %236 = vmatpush.msra.mxu0 %v211
    %237 = vmatpush.msra.mxu0 %v210
    %238 = vmatpush.msra.mxu0 %v209
    %239 = vmatmul.f32.gmra.mxu0 %v218
    %v240 = vpop.f32.mrf.mxu0
    %v241 = vadd.f32 %v215, %v240
    %242 = vmatmul.f32.gmra.mxu0 %v221
    %v243 = vpop.f32.mrf.mxu0
    %v244 = vadd.f32 %v215, %v243
    %245 = vdwg.mxu0
    %v247 = vsel %vm138, %v163, 0
    %v250 = vsel %vm138, %v166, 0
    %v253 = vsel %vm138, %v202, 0
    %v256 = vsel %vm138, %v205, 0
    %258 = vmatpush.xpose.msra.mxu0 0.0
    %259 = vmatpush.xpose.msra.mxu0 0.0
    %260 = vmatpush.xpose.msra.mxu0 0.0
    %261 = vmatpush.xpose.msra.mxu0 0.0
    %262 = vmatpush.xpose.msra.mxu0 0.0
    %263 = vmatpush.xpose.msra.mxu0 0.0
    %264 = vmatpush.xpose.msra.mxu0 0.0
    %265 = vmatpush.xpose.msra.mxu0 0.0
    %266 = vmatpush.xpose.msra.mxu0 0.0
    %267 = vmatpush.xpose.msra.mxu0 0.0
    %268 = vmatpush.xpose.msra.mxu0 0.0
    %269 = vmatpush.xpose.msra.mxu0 0.0
    %270 = vmatpush.xpose.msra.mxu0 0.0
    %271 = vmatpush.xpose.msra.mxu0 0.0
    %272 = vmatpush.xpose.msra.mxu0 %v256
    %273 = vmatpush.xpose.msra.mxu0 %v253
    %274 = vmatmul.f32.gmra.mxu0 %v247
    %v275 = vpop.f32.mrf.mxu0
    %v276 = vadd.f32 0.0, %v275
    %277 = vmatmul.f32.gmra.mxu0 %v250
    %v278 = vpop.f32.mrf.mxu0
    %v279 = vadd.f32 0.0, %v278
    %280 = vdwg.mxu0
    %v281 = vmul.f32 %v276, 5.656854
    %v282 = vmul.f32 %v279, 5.656854
    %v283 = vld [vmem:[%s9] sm:$0xff]
    %v284 = vld [vmem:[%s9 + $0x8] sm:$0xff]
    %v285 = vadd.f32 %v281, %v283
    %v286 = vadd.f32 %v282, %v284
    %vm287 = vcmask 130048
    %v288 = vsel %vm287, %v285, -inf
    %289 = vmax.xlane.f32.xlu0 %v288
    %v290 = vpop.xlane.xlu0 %289
    %v291 = vsel %vm287, %v286, -inf
    %292 = vmax.xlane.f32.xlu0 %v291
    %v293 = vpop.xlane.xlu0 %292
    %v294 = vsub.f32 %v285, %v290
    %v295 = vsub.f32 %v286, %v293
    %v296 = vmul.f32 %v294, 1.442695
    %v297 = vpow.pop %v296
    %v298 = vmul.f32 %v295, 1.442695
    %v299 = vpow.pop %v298
    %v300 = vsel %vm287, %v297, 0.0
    %301 = vadd.xlane.f32.xlu0 %v300
    %v302 = vpop.xlane.xlu0 %301
    %v303 = vsel %vm287, %v299, 0.0
    %304 = vadd.xlane.f32.xlu0 %v303
    %v305 = vpop.xlane.xlu0 %304
    %v306 = vrcp.pop %v302
    %v307 = vmul.f32 %v302, %v306
    %v308 = vsub.f32 1.0, %v307
    %v309 = vmul.f32 %v306, %v308
    %v310 = vadd.f32 %v306, %v309
    %vm311 = vweird.f32 %v302
    %vm312 = vweird.f32 %v306
    %vm313 = vmor %vm311, %vm312
    %v314 = vsel %vm313, %v306, %v310
    %v315 = vand.u32 2147483647, %v302
    %vm316 = vcmp.eq.f32.partialorder %v315, 8.507059e+37
    %v317 = vand.u32 %v302, 2147483648
    %v318 = vor.u32 1.1754944e-38, %v317
    %v319 = vsel %vm316, %v318, %v314
    %v320 = vmul.f32 %v297, %v319
    %v321 = vrcp.pop %v305
    %v322 = vmul.f32 %v305, %v321
    %v323 = vsub.f32 1.0, %v322
    %v324 = vmul.f32 %v321, %v323
    %v325 = vadd.f32 %v321, %v324
    %vm326 = vweird.f32 %v305
    %vm327 = vweird.f32 %v321
    %vm328 = vmor %vm326, %vm327
    %v329 = vsel %vm328, %v321, %v325
    %v330 = vand.u32 2147483647, %v305
    %vm331 = vcmp.eq.f32.partialorder %v330, 8.507059e+37
    %v332 = vand.u32 %v305, 2147483648
    %v333 = vor.u32 1.1754944e-38, %v332
    %v334 = vsel %vm331, %v333, %v329
    %v335 = vmul.f32 %v299, %v334
    %v337 = vsel %vm287, %v320, 0
    %v340 = vsel %vm287, %v335, 0
    %342 = vmatpush.msra.mxu0 0.0
    %343 = vmatpush.msra.mxu0 0.0
    %344 = vmatpush.msra.mxu0 0.0
    %345 = vmatpush.msra.mxu0 0.0
    %346 = vmatpush.msra.mxu0 0.0
    %347 = vmatpush.msra.mxu0 0.0
    %348 = vmatpush.msra.mxu0 0.0
    %349 = vmatpush.msra.mxu0 0.0
    %350 = vmatpush.msra.mxu0 0.0
    %351 = vmatpush.msra.mxu0 0.0
    %352 = vmatpush.msra.mxu0 0.0
    %353 = vmatpush.msra.mxu0 0.0
    %354 = vmatpush.msra.mxu0 0.0
    %355 = vmatpush.msra.mxu0 0.0
    %356 = vmatpush.msra.mxu0 %v244
    %357 = vmatpush.msra.mxu0 %v241
    %358 = vmatmul.f32.gmra.mxu0 %v337
    %v359 = vpop.f32.mrf.mxu0
    %v360 = vadd.f32 0.0, %v359
    %361 = vmatmul.f32.gmra.mxu0 %v340
    %v362 = vpop.f32.mrf.mxu0
    %v363 = vadd.f32 0.0, %v362
    %364 = vdwg.mxu0
    %365 = vst.msk [vmem:[#allocation13] sm:$0xff] %vm138, %v360
    %366 = vst.msk [vmem:[#allocation13 + $0x8] sm:$0xff] %vm138, %v363
    // Predicated region
    $region66: #{attention_model.1} parent=1 // pred_check
      _
    $region67: #{attention_model.1} parent=1 // pred_check_branch
      %368 = sbr.rel (0) target = $region69
    $region68: #{attention_model.1} parent=1 // pred_region
      %370 = vsyncadd [#allocation4], 0
      %s371 = sshll.u32 [#allocation13], 4
      %s372 = int_to_ptr.vmem [resolvable:$true] %s371
      %s373 = sshll.u32 %s10, 4
      %s374 = int_to_ptr.hbm [resolvable:$true] %s373
      %379 = dma.vmem_to_hbm [thread:$0]  %s372, 256, %s374, [#allocation4], 128, 128, 8
    $region69: #{attention_model.1} parent=1 // pred_fallthru
      _
    // Predicated region
    $region70: #{attention_model.1} parent=1 // pred_check
      _
    $region71: #{attention_model.1} parent=1 // pred_check_branch
      %381 = sbr.rel (0) target = $region73
    $region72: #{attention_model.1} parent=1 // pred_region
      %383 = dma.done [#allocation4], 256
    $region73: #{attention_model.1} parent=1 // pred_fallthru
      _
    %384 = vsyncpa [#allocation3], 1
    %385 = vsyncpa [#allocation6], 1
    %386 = vsyncpa [#allocation9], 1
    %387 = vsyncpa [#allocation12], 1
    %388 = vsyncpa [#allocation4], 1

</llo_original>
